<compile_context>
chip_gen: v5e
topology: v5e:2x2
jax: 0.10.0
libtpu: 0.0.40
codegen_flags: <defaults>
</compile_context>

<pallas_src>
import math

import jax
import jax.numpy as jnp
from jax.experimental import pallas as pl
from jax.experimental.pallas import tpu as pltpu

# -log(clip(one_hot, 1e-4, 1)) off the label column
_NEG_LOG_1E4 = -math.log(1e-4)


def _sce_kernel(labels_ref, pred_ref, out_ref):
    # labels_ref: (1, TN) int32   pred_ref: (C, TN) logits   out_ref: (2, TN) f32
    pred = pred_ref[...].astype(jnp.float32)          # cast after DMA
    labels = labels_ref[...]                           # (1, TN)
    c, tn = pred.shape

    # one-hot mask over the class (sublane) axis, lane-dense compare
    cls = jax.lax.broadcasted_iota(jnp.int32, (c, tn), 0)
    onehot = (cls == labels).astype(jnp.float32)       # (C, TN)

    # numerically stable softmax statistics (class axis = sublanes)
    m = jnp.max(pred, axis=0, keepdims=True)           # (1, TN)
    shifted = pred - m                                  # (C, TN)
    expv = jnp.exp(shifted)                             # only full-tile EUP op
    sumexp = jnp.sum(expv, axis=0, keepdims=True)       # (1, TN)

    # CE per sample: log(sum exp) - shifted[label]
    shifted_lab = jnp.sum(onehot * shifted, axis=0, keepdims=True)
    ce_per = jnp.log(sumexp) - shifted_lab               # (1, TN)

    # RCE per sample: -log(1e-4) * sum_{c != label} clip(softmax, 1e-7, 1)
    #   clip(p, 1e-7, 1) == max(expv, 1e-7 * sumexp) / sumexp  (p <= 1 always)
    thresh = jnp.float32(1e-7) * sumexp                  # (1, TN)
    clipped = jnp.maximum(expv, thresh)                  # (C, TN)
    sum_clip = jnp.sum(clipped, axis=0, keepdims=True)   # (1, TN)
    expv_lab = jnp.sum(onehot * expv, axis=0, keepdims=True)
    clip_lab = jnp.maximum(expv_lab, thresh)
    # Reciprocal is per-sample only (a (1, TN) vector, ~1/C of a full-tile op),
    # so the exact path is essentially free and keeps us within 1e-5 of the
    # reference; flip to approx=True if ~1e-4 relative error is acceptable.
    inv_sumexp = pl.reciprocal(sumexp, approx=False)
    rce_per = jnp.float32(_NEG_LOG_1E4) * (sum_clip - clip_lab) * inv_sumexp

    out_ref[...] = jnp.concatenate([ce_per, rce_per], axis=0)


def sce_loss(pred, labels, *, alpha, beta, num_classes=10, tile_n=2048):
    """Symmetric Cross Entropy loss. pred: (N, C) float, labels: (N,) int."""
    n, c = pred.shape
    assert c == num_classes

    # Lane-dense layout: (C, N) logits, (1, N) labels (wrapper-side plumbing).
    pred_t = pred.T
    labels_row = labels.astype(jnp.int32).reshape(1, n)

    # Batch tile: multiple of 128 lanes, capped at tile_n; pad N up to a
    # multiple of the tile (padded columns are dropped before the mean).
    tn = min(tile_n, ((n + 127) // 128) * 128)
    tn = ((tn + 127) // 128) * 128
    n_pad = ((n + tn - 1) // tn) * tn
    if n_pad != n:
        pred_t = jnp.pad(pred_t, ((0, 0), (0, n_pad - n)))
        labels_row = jnp.pad(labels_row, ((0, 0), (0, n_pad - n)))

    cost = pl.CostEstimate(
        flops=6 * n_pad * c,
        transcendentals=n_pad * c + 2 * n_pad,
        bytes_accessed=n_pad * c * pred.dtype.itemsize + n_pad * 4 + 2 * n_pad * 4,
    )

    out = pl.pallas_call(
        _sce_kernel,
        out_shape=jax.ShapeDtypeStruct((2, n_pad), jnp.float32),
        grid=(n_pad // tn,),
        in_specs=[
            pl.BlockSpec((1, tn), lambda i: (0, i)),   # labels, lane-dense
            pl.BlockSpec((c, tn), lambda i: (0, i)),   # logits tile (C, TN)
        ],
        out_specs=pl.BlockSpec((2, tn), lambda i: (0, i)),
        compiler_params=pltpu.CompilerParams(
            dimension_semantics=("parallel",),          # independent batch tiles
        ),
        cost_estimate=cost,
    )(labels_row, pred_t)

    ce = jnp.mean(out[0, :n])
    rce = jnp.mean(out[1, :n])
    return alpha * ce + beta * rce


def _sce_ref(pred, labels, *, alpha, beta, num_classes=10):
    """Plain-JAX reference mirroring the PyTorch module."""
    pred = pred.astype(jnp.float32)
    logp = jax.nn.log_softmax(pred, axis=1)
    onehot = jax.nn.one_hot(labels, num_classes, dtype=jnp.float32)
    ce = -jnp.mean(jnp.sum(onehot * logp, axis=1))
    probs = jnp.clip(jax.nn.softmax(pred, axis=1), 1e-7, 1.0)
    onehot_c = jnp.clip(onehot, 1e-4, 1.0)
    rce = -jnp.sum(probs * jnp.log(onehot_c), axis=1)
    return alpha * ce + beta * jnp.mean(rce)


if __name__ == "__main__":
    key = jax.random.PRNGKey(0)
    NUM_CLASSES = 10
    ALPHA, BETA = 0.1, 1.0

    # Case 1: small batch, single tile.
    k1, k2, k3, k4 = jax.random.split(key, 4)
    N1 = 8
    pred1 = jax.random.normal(k1, (N1, NUM_CLASSES), dtype=jnp.float32)
    labels1 = jax.random.randint(k2, (N1,), 0, NUM_CLASSES, dtype=jnp.int32)
    loss1 = jax.block_until_ready(
        sce_loss(pred1, labels1, alpha=ALPHA, beta=BETA, num_classes=NUM_CLASSES))
    ref1 = _sce_ref(pred1, labels1, alpha=ALPHA, beta=BETA, num_classes=NUM_CLASSES)
    assert jnp.allclose(loss1, ref1, rtol=1e-5, atol=1e-5), (loss1, ref1)

    # Case 2: non-multiple batch with a multi-step grid (padding + tiling path).
    N2 = 300
    pred2 = jax.random.normal(k3, (N2, NUM_CLASSES), dtype=jnp.float32)
    labels2 = jax.random.randint(k4, (N2,), 0, NUM_CLASSES, dtype=jnp.int32)
    loss2 = jax.block_until_ready(
        sce_loss(pred2, labels2, alpha=ALPHA, beta=BETA,
                 num_classes=NUM_CLASSES, tile_n=128))
    ref2 = _sce_ref(pred2, labels2, alpha=ALPHA, beta=BETA, num_classes=NUM_CLASSES)
    assert jnp.allclose(loss2, ref2, rtol=1e-5, atol=1e-5), (loss2, ref2)

    print("KERNEL_OK")
</pallas_src>

<mosaic_0001>
module attributes {stable_mosaic.version = 11 : i64} {
  func.func @_sce_kernel(%arg0: i32, %arg1: memref<1x128xi32, #tpu.memory_space<vmem>>, %arg2: memref<10x128xf32, #tpu.memory_space<vmem>>, %arg3: memref<2x128xf32, #tpu.memory_space<vmem>>) attributes {dimension_semantics = [#tpu.dimension_semantics<parallel>], iteration_bounds = array<i64: 1>, scalar_prefetch = 0 : i64, scratch_operands = 0 : i64, tpu.core_type = #tpu.core_type<tc>, window_params = [{transform_indices = @transform_0, window_bounds = array<i64: 1, 128>}, {transform_indices = @transform_1, window_bounds = array<i64: 10, 128>}, {transform_indices = @transform_2, window_bounds = array<i64: 2, 128>}]} {
    %c0 = arith.constant 0 : index
    %c0_0 = arith.constant 0 : index
    %0 = vector.load %arg2[%c0, %c0_0] : memref<10x128xf32, #tpu.memory_space<vmem>>, vector<10x128xf32>
    %c0_1 = arith.constant 0 : index
    %c0_2 = arith.constant 0 : index
    %1 = vector.load %arg1[%c0_1, %c0_2] : memref<1x128xi32, #tpu.memory_space<vmem>>, vector<1x128xi32>
    %2 = tpu.iota {dimensions = array<i32: 0>} : vector<10x128xi32>
    %3 = vector.broadcast %1 : vector<1x128xi32> to vector<10x128xi32>
    %4 = arith.cmpi eq, %2, %3 : vector<10x128xi32>
    %5 = arith.extui %4 : vector<10x128xi1> to vector<10x128xi32>
    %6 = arith.sitofp %5 : vector<10x128xi32> to vector<10x128xf32>
    %cst = arith.constant dense<0xFF800000> : vector<128xf32>
    %7 = vector.multi_reduction <maximumf>, %0, %cst [0] : vector<10x128xf32> to vector<128xf32>
    %8 = vector.shape_cast %7 : vector<128xf32> to vector<1x128xf32>
    %9 = vector.broadcast %8 : vector<1x128xf32> to vector<10x128xf32>
    %10 = arith.subf %0, %9 : vector<10x128xf32>
    %11 = math.exp %10 : vector<10x128xf32>
    %cst_3 = arith.constant dense<0.000000e+00> : vector<128xf32>
    %12 = vector.multi_reduction <add>, %11, %cst_3 [0] : vector<10x128xf32> to vector<128xf32>
    %13 = vector.shape_cast %12 : vector<128xf32> to vector<1x128xf32>
    %14 = arith.mulf %6, %10 : vector<10x128xf32>
    %cst_4 = arith.constant dense<0.000000e+00> : vector<128xf32>
    %15 = vector.multi_reduction <add>, %14, %cst_4 [0] : vector<10x128xf32> to vector<128xf32>
    %16 = vector.shape_cast %15 : vector<128xf32> to vector<1x128xf32>
    %17 = math.log %13 : vector<1x128xf32>
    %18 = arith.subf %17, %16 : vector<1x128xf32>
    %cst_5 = arith.constant 1.000000e-07 : f32
    %19 = vector.broadcast %cst_5 : f32 to vector<1x128xf32>
    %20 = arith.mulf %19, %13 : vector<1x128xf32>
    %21 = vector.broadcast %20 : vector<1x128xf32> to vector<10x128xf32>
    %22 = arith.maximumf %11, %21 : vector<10x128xf32>
    %cst_6 = arith.constant dense<0.000000e+00> : vector<128xf32>
    %23 = vector.multi_reduction <add>, %22, %cst_6 [0] : vector<10x128xf32> to vector<128xf32>
    %24 = vector.shape_cast %23 : vector<128xf32> to vector<1x128xf32>
    %25 = arith.mulf %6, %11 : vector<10x128xf32>
    %cst_7 = arith.constant dense<0.000000e+00> : vector<128xf32>
    %26 = vector.multi_reduction <add>, %25, %cst_7 [0] : vector<10x128xf32> to vector<128xf32>
    %27 = vector.shape_cast %26 : vector<128xf32> to vector<1x128xf32>
    %28 = arith.maximumf %27, %20 : vector<1x128xf32>
    %29 = tpu.reciprocal %13 : vector<1x128xf32> -> vector<1x128xf32>
    %30 = arith.subf %24, %28 : vector<1x128xf32>
    %cst_8 = arith.constant 9.21034049 : f32
    %31 = vector.broadcast %cst_8 : f32 to vector<1x128xf32>
    %32 = arith.mulf %31, %30 : vector<1x128xf32>
    %33 = arith.mulf %32, %29 : vector<1x128xf32>
    %34 = tpu.concatenate %18, %33 in 0 : vector<1x128xf32>, vector<1x128xf32> -> vector<2x128xf32>
    %c0_9 = arith.constant 0 : index
    %c0_10 = arith.constant 0 : index
    %35 = vector.load %arg3[%c0_9, %c0_10] : memref<2x128xf32, #tpu.memory_space<vmem>>, vector<2x128xf32>
    tpu.vector_store %arg3[%c0_9, %c0_10], %34 {strides = array<i32>} : memref<2x128xf32, #tpu.memory_space<vmem>>, vector<2x128xf32>,
    return
  }
  func.func @transform_0(%arg0: i32) -> (i32, i32) {
    %c0_i32 = arith.constant 0 : i32
    %c0_i32_0 = arith.constant 0 : i32
    return %c0_i32, %arg0 : i32, i32
  }
  func.func @transform_1(%arg0: i32) -> (i32, i32) {
    %c0_i32 = arith.constant 0 : i32
    %c0_i32_0 = arith.constant 0 : i32
    return %c0_i32, %arg0 : i32, i32
  }
  func.func @transform_2(%arg0: i32) -> (i32, i32) {
    %c0_i32 = arith.constant 0 : i32
    %c0_i32_0 = arith.constant 0 : i32
    return %c0_i32, %arg0 : i32, i32
  }
}

</mosaic_0001>

<llo_original>
// kernel: tpu_custom_call.1
$region0: #{tpu_custom_call.1}
  #allocation0 [shape = 'u32[]', space=smem, size = 0x4, offset = 0x4, fixed_abs, tag = 'smem constant byte address 0x4 - core index']
  #allocation1 [shape = 'u32[72,128]{1,0:T(1,128)}', space=vmem, size = 0x9000, scoped, tag = 'internal scratch']
  %s0 = inlined_call_operand.hbm [shape: s32[1,128], index: 0, kind: input, shape index: {}]
  %s1 = inlined_call_operand.hbm [shape: f32[10,128], index: 1, kind: input, shape index: {}]
  %s2 = inlined_call_operand.hbm [shape: f32[2,128], index: 2, kind: output, shape index: {}]
  %s3 = sld [smem:[#allocation0]]
  $region26: #{tpu_custom_call.1} parent=0
    _
  %s5 = ssub.s32 1, %s3
  %s6 = scalar_select 0, %s5, %s3
  $region1: #{tpu_custom_call.1} parent=0
    #allocation2 [shape = 'u8[512]{0}', space=vmem, size = 0x400, scoped, tag = 'input window, operand 0, single buffered']
    #allocation3 [shape = 's32[1]{0}', space=sflag, size = 0x4, scoped, tag = 'scoped memory for tpu_custom_call.1']
    #allocation4 [shape = 's32[1]{0}', space=sflag, size = 0x4, scoped, tag = 'scoped memory for tpu_custom_call.1']
    #allocation5 [shape = 'u8[8192]{0}', space=vmem, size = 0x2000, scoped, tag = 'input window, operand 1, single buffered']
    #allocation6 [shape = 's32[1]{0}', space=sflag, size = 0x4, scoped, tag = 'scoped memory for tpu_custom_call.1']
    #allocation7 [shape = 'u8[1024]{0}', space=vmem, size = 0x400, scoped, tag = 'output window, operand 0, single buffered']
    %7 = vsyncpa [#allocation3], 0
    %8 = vsyncpa [#allocation6], 0
    %9 = vsyncpa [#allocation4], 0
    // Predicated region
    $region2: #{tpu_custom_call.1} parent=1 // pred_check
      _
    $region3: #{tpu_custom_call.1} parent=1 // pred_check_branch
      %11 = sbr.rel (0) target = $region5
    $region4: #{tpu_custom_call.1} parent=1 // pred_region
      %13 = vsyncadd [#allocation3], 0
      %s15 = sshll.u32 %s0, 4
      %s16 = int_to_ptr.hbm [resolvable:$true] %s15
      %s17 = sshll.u32 [#allocation2], 4
      %s18 = int_to_ptr.vmem [resolvable:$true] %s17
      %20 = dma.hbm_to_vmem [thread:$0]  %s16, 16, %s18, [#allocation3]
    $region5: #{tpu_custom_call.1} parent=1 // pred_fallthru
      _
    // Predicated region
    $region6: #{tpu_custom_call.1} parent=1 // pred_check
      _
    $region7: #{tpu_custom_call.1} parent=1 // pred_check_branch
      %22 = sbr.rel (0) target = $region9
    $region8: #{tpu_custom_call.1} parent=1 // pred_region
      %24 = vsyncadd [#allocation6], 0
      %s25 = sshll.u32 %s1, 4
      %s26 = int_to_ptr.hbm [resolvable:$true] %s25
      %s27 = sshll.u32 [#allocation5], 4
      %s28 = int_to_ptr.vmem [resolvable:$true] %s27
      %33 = dma.hbm_to_vmem [thread:$0]  %s26, 256, %s28, [#allocation6], 128, 128, 8
    $region9: #{tpu_custom_call.1} parent=1 // pred_fallthru
      _
    // Predicated region
    $region10: #{tpu_custom_call.1} parent=1 // pred_check
      _
    $region11: #{tpu_custom_call.1} parent=1 // pred_check_branch
      %35 = sbr.rel (0) target = $region13
    $region12: #{tpu_custom_call.1} parent=1 // pred_region
      %37 = dma.done [#allocation3], 16
    $region13: #{tpu_custom_call.1} parent=1 // pred_fallthru
      _
    // Predicated region
    $region14: #{tpu_custom_call.1} parent=1 // pred_check
      _
    $region15: #{tpu_custom_call.1} parent=1 // pred_check_branch
      %39 = sbr.rel (0) target = $region17
    $region16: #{tpu_custom_call.1} parent=1 // pred_region
      %41 = dma.done [#allocation6], 256
    $region17: #{tpu_custom_call.1} parent=1 // pred_fallthru
      _
    %v42 = vld [vmem:[#allocation5] sm:$0xff]
    %v43 = vld [vmem:[#allocation5 + $0x8] sm:$0x3]
    %v44 = vld [vmem:[#allocation2] sm:$0x1]
    %v45 = vlaneseq
    %v46 = vshrl.u32 %v45, 7
    %v47 = vadd.s32 %v46, 8
    %v48 = vperm.slane %v44, 0
    %vm49 = vcmp.eq.s32.totalorder %v46, %v48
    %vm50 = vcmp.eq.s32.totalorder %v47, %v48
    %v51 = vsel %vm49, 1, 0
    %v52 = vsel %vm50, 1, 0
    %v53 = vcvt.s32.f32 %v51
    %v54 = vcvt.s32.f32 %v52
    %vm55 = vcmask 1041408
    %v56 = vsel %vm55, %v43, -inf
    %v57 = vmax.f32 %v42, %v56
    %v58 = vrot.slane %v57, 4
    %v59 = vmax.f32 %v57, %v58
    %v60 = vrot.slane %v59, 2
    %v61 = vmax.f32 %v59, %v60
    %v62 = vrot.slane %v61, 1
    %v63 = vmax.f32 %v61, %v62
    %v64 = vsub.f32 %v42, %v63
    %v65 = vsub.f32 %v43, %v63
    %v66 = vmul.f32 %v64, 1.442695
    %v67 = vpow.pop %v66
    %v68 = vmul.f32 %v65, 1.442695
    %v69 = vpow.pop %v68
    %v70 = vsel %vm55, %v69, 0.0
    %v71 = vadd.f32 %v67, %v70
    %v72 = vrot.slane %v71, 4
    %v73 = vadd.f32 %v71, %v72
    %v74 = vrot.slane %v73, 2
    %v75 = vadd.f32 %v73, %v74
    %v76 = vrot.slane %v75, 1
    %v77 = vadd.f32 %v75, %v76
    %v78 = vmul.f32 %v53, %v64
    %v79 = vmul.f32 %v54, %v65
    %v80 = vsel %vm55, %v79, 0.0
    %v81 = vadd.f32 %v78, %v80
    %v82 = vrot.slane %v81, 4
    %v83 = vadd.f32 %v81, %v82
    %v84 = vrot.slane %v83, 2
    %v85 = vadd.f32 %v83, %v84
    %v86 = vrot.slane %v85, 1
    %v87 = vadd.f32 %v85, %v86
    %v88 = vlog2.pop %v77
    %v89 = vmul.f32 %v88, 0.6931472
    %v90 = vsub.f32 %v89, %v87
    %v91 = vmul.f32 %v77, 1e-07
    %v92 = vmax.f32 %v67, %v91
    %v93 = vmax.f32 %v69, %v91
    %v94 = vsel %vm55, %v93, 0.0
    %v95 = vadd.f32 %v92, %v94
    %v96 = vrot.slane %v95, 4
    %v97 = vadd.f32 %v95, %v96
    %v98 = vrot.slane %v97, 2
    %v99 = vadd.f32 %v97, %v98
    %v100 = vrot.slane %v99, 1
    %v101 = vadd.f32 %v99, %v100
    %v102 = vmul.f32 %v53, %v67
    %v103 = vmul.f32 %v54, %v69
    %v104 = vsel %vm55, %v103, 0.0
    %v105 = vadd.f32 %v102, %v104
    %v106 = vrot.slane %v105, 4
    %v107 = vadd.f32 %v105, %v106
    %v108 = vrot.slane %v107, 2
    %v109 = vadd.f32 %v107, %v108
    %v110 = vrot.slane %v109, 1
    %v111 = vadd.f32 %v109, %v110
    %v112 = vmax.f32 %v111, %v91
    %v113 = vrcp.pop %v77
    %v114 = vmul.f32 %v77, %v113
    %v115 = vsub.f32 1.0, %v114
    %v116 = vmul.f32 %v113, %v115
    %v117 = vadd.f32 %v113, %v116
    %vm118 = vweird.f32 %v77
    %vm119 = vweird.f32 %v113
    %vm120 = vmor %vm118, %vm119
    %v121 = vsel %vm120, %v113, %v117
    %v122 = vand.u32 2147483647, %v77
    %vm123 = vcmp.eq.f32.partialorder %v122, 8.507059e+37
    %v124 = vand.u32 %v77, 2147483648
    %v125 = vor.u32 1.1754944e-38, %v124
    %v126 = vsel %vm123, %v125, %v121
    %v127 = vsub.f32 %v101, %v112
    %v128 = vmul.f32 %v127, 9.2103405
    %v129 = vmul.f32 %v128, %v126
    %vm130 = vcmask 1040384
    %v131 = vsel %vm130, %v90, %v129
    %132 = vst [vmem:[#allocation7] sm:$0x3] %v131
    // Predicated region
    $region18: #{tpu_custom_call.1} parent=1 // pred_check
      _
    $region19: #{tpu_custom_call.1} parent=1 // pred_check_branch
      %134 = sbr.rel (0) target = $region21
    $region20: #{tpu_custom_call.1} parent=1 // pred_region
      %136 = vsyncadd [#allocation4], 0
      %s138 = sshll.u32 [#allocation7], 4
      %s139 = int_to_ptr.vmem [resolvable:$true] %s138
      %s140 = sshll.u32 %s2, 4
      %s141 = int_to_ptr.hbm [resolvable:$true] %s140
      %143 = dma.vmem_to_hbm [thread:$0]  %s139, 32, %s141, [#allocation4]
    $region21: #{tpu_custom_call.1} parent=1 // pred_fallthru
      _
    // Predicated region
    $region22: #{tpu_custom_call.1} parent=1 // pred_check
      _
    $region23: #{tpu_custom_call.1} parent=1 // pred_check_branch
      %145 = sbr.rel (0) target = $region25
    $region24: #{tpu_custom_call.1} parent=1 // pred_region
      %147 = dma.done [#allocation4], 32
    $region25: #{tpu_custom_call.1} parent=1 // pred_fallthru
      _
    %148 = vsyncpa [#allocation3], 1
    %149 = vsyncpa [#allocation6], 1
    %150 = vsyncpa [#allocation4], 1

</llo_original>
